<compile_context>
chip_gen: v7x
topology: tpu7x:2x2x1
jax: 0.10.0
libtpu: 0.0.40
codegen_flags: <defaults>
</compile_context>

<pallas_src>
import functools
import math

import jax
import jax.numpy as jnp
from jax.experimental import pallas as pl
from jax.experimental.pallas import tpu as pltpu

_LANE = 128
_SUBLANE = 8
_LOG2 = math.log(2.0)


def _stable_logcosh_f32(d):
    """Numerically stable log(cosh(d)) in f32 (exact 0 at d=0, no overflow)."""
    a = jnp.abs(d.astype(jnp.float32))
    return a + jnp.log1p(jnp.exp(-2.0 * a)) - _LOG2


def _sublane_multiple(dtype):
    """Packed sublane count: 8 for 32-bit, 16 for bf16, 32 for int8."""
    itemsize = jnp.dtype(dtype).itemsize
    return _SUBLANE * max(1, 4 // max(1, itemsize))


def _logcosh_partial_kernel(pred_ref, true_ref, out_ref, *,
                            block_rows, valid_rows, needs_mask):
    """One grid step: (8,128) f32 partial sum of log(cosh(pred-true)) for this block."""
    d = pred_ref[...].astype(jnp.float32) - true_ref[...].astype(jnp.float32)
    a = jnp.abs(d)
    # Stable log(cosh(a)) = a + log1p(exp(-2a)) - log(2).
    val = a + jnp.log1p(jnp.exp(-2.0 * a)) - _LOG2

    if needs_mask:
        # Last (partial) block reads unspecified rows past the array end; select
        # them away (true select, so garbage NaN/Inf cannot leak).
        row0 = pl.program_id(0) * block_rows
        rows = row0 + jax.lax.broadcasted_iota(jnp.int32, (block_rows, _LANE), 0)
        val = jnp.where(rows < valid_rows, val, 0.0)

    if block_rows >= 64 and block_rows % 64 == 0:
        # Two-level tree reduction: 8 independent (8,128)-vreg accumulator
        # chains of length block_rows//64, then 7 combining adds.  Breaks the
        # single serial dependent-add chain at large tiles.
        v = val.reshape(block_rows // 64, 8, _SUBLANE, _LANE)
        out_ref[...] = v.sum(axis=0).sum(axis=0)
    else:
        # Small blocks: simple vreg accumulation (chain length block_rows//8 - 1).
        out_ref[...] = val.reshape(block_rows // _SUBLANE, _SUBLANE, _LANE).sum(axis=0)


def logcosh_loss(pred, true, *, block_rows=4096):
    """Equivalent of MyLoss().forward(pred, true) -> scalar sum."""
    assert pred.shape == true.shape
    p = pred.reshape(-1)
    t = true.reshape(-1)
    n = p.shape[0]

    # dtype-aware sublane alignment (keeps packed loads unmasked for bf16/int8).
    sub = max(_sublane_multiple(pred.dtype), _sublane_multiple(true.dtype))
    align = sub * _LANE                      # elements per aligned row-group
    main = (n // align) * align              # (sub,128)-aligned prefix length

    total = jnp.float32(0.0)

    if main > 0:
        # No jnp.pad: zero-copy reshape when already aligned, otherwise only the
        # aligned prefix is touched and the tiny tail is handled below in JAX.
        pm = p if main == n else p[:main]
        tm = t if main == n else t[:main]
        arr_rows = main // _LANE
        pm = pm.reshape(arr_rows, _LANE)
        tm = tm.reshape(arr_rows, _LANE)

        # Tile rows: big tiles for large inputs, single step for tiny inputs.
        br = max(sub, min(int(block_rows), arr_rows))
        br -= br % sub
        if br >= 64:
            br -= br % 64                    # enables the two-level reduction
        num_blocks = pl.cdiv(arr_rows, br)
        needs_mask = (arr_rows % br) != 0

        kernel = functools.partial(
            _logcosh_partial_kernel,
            block_rows=br,
            valid_rows=arr_rows,
            needs_mask=needs_mask,
        )

        partials = pl.pallas_call(
            kernel,
            out_shape=jax.ShapeDtypeStruct((num_blocks, _SUBLANE, _LANE), jnp.float32),
            grid_spec=pltpu.PrefetchScalarGridSpec(
                num_scalar_prefetch=0,
                grid=(num_blocks,),
                in_specs=[
                    pl.BlockSpec((br, _LANE), lambda i: (i, 0)),
                    pl.BlockSpec((br, _LANE), lambda i: (i, 0)),
                ],
                out_specs=pl.BlockSpec((None, _SUBLANE, _LANE), lambda i: (i, 0, 0)),
            ),
            compiler_params=pltpu.CompilerParams(
                # Independent per-block partials -> parallel axis.
                dimension_semantics=("parallel",),
            ),
        )(pm, tm)

        # Final tiny reduction (num_blocks * 1024 floats) in plain JAX.
        total = total + jnp.sum(partials)

    if main < n:
        # Ragged tail (< sub*128 elements) in plain JAX with the same stable form.
        total = total + jnp.sum(_stable_logcosh_f32(
            p[main:].astype(jnp.float32) - t[main:].astype(jnp.float32)))

    return total


if __name__ == "__main__":
    key = jax.random.PRNGKey(0)
    k1, k2 = jax.random.split(key)
    # Small NCHW-like shapes consistent with an anomaly-detection reconstruction loss.
    pred = jax.random.normal(k1, (2, 4, 16, 16), dtype=jnp.float32)
    true = jax.random.normal(k2, (2, 4, 16, 16), dtype=jnp.float32)

    loss = logcosh_loss(pred, true)
    jax.block_until_ready(loss)

    # Cross-check against a pure-JAX reference of the PyTorch forward.
    ref = jnp.sum(jnp.log(jnp.cosh(pred - true)))
    assert jnp.allclose(loss, ref, rtol=1e-5, atol=1e-5), (loss, ref)

    # Also exercise an unaligned flat size (hits the prefix + JAX-tail path).
    pred2 = jax.random.normal(k1, (3, 5, 7, 11), dtype=jnp.float32)
    true2 = jax.random.normal(k2, (3, 5, 7, 11), dtype=jnp.float32)
    loss2 = logcosh_loss(pred2, true2)
    jax.block_until_ready(loss2)
    ref2 = jnp.sum(jnp.log(jnp.cosh(pred2 - true2)))
    assert jnp.allclose(loss2, ref2, rtol=1e-5, atol=1e-5), (loss2, ref2)

    print("KERNEL_OK")
</pallas_src>

<mosaic_0001>
module attributes {stable_mosaic.version = 11 : i64} {
  func.func @_logcosh_partial_kernel(%arg0: i32, %arg1: memref<16x128xf32, #tpu.memory_space<vmem>>, %arg2: memref<16x128xf32, #tpu.memory_space<vmem>>, %arg3: memref<1x8x128xf32, #tpu.memory_space<vmem>>) attributes {dimension_semantics = [#tpu.dimension_semantics<parallel>], iteration_bounds = array<i64: 1>, scalar_prefetch = 0 : i64, scratch_operands = 0 : i64, tpu.core_type = #tpu.core_type<tc>, window_params = [{transform_indices = @transform_0, window_bounds = array<i64: 16, 128>}, {transform_indices = @transform_1, window_bounds = array<i64: 16, 128>}, {transform_indices = @transform_2, window_bounds = array<i64: 1, 8, 128>}]} {
    %c0 = arith.constant 0 : index
    %c0_0 = arith.constant 0 : index
    %0 = vector.load %arg1[%c0, %c0_0] : memref<16x128xf32, #tpu.memory_space<vmem>>, vector<16x128xf32>
    %c0_1 = arith.constant 0 : index
    %c0_2 = arith.constant 0 : index
    %1 = vector.load %arg2[%c0_1, %c0_2] : memref<16x128xf32, #tpu.memory_space<vmem>>, vector<16x128xf32>
    %2 = arith.subf %0, %1 : vector<16x128xf32>
    %3 = math.absf %2 : vector<16x128xf32>
    %cst = arith.constant -2.000000e+00 : f32
    %4 = vector.broadcast %cst : f32 to vector<16x128xf32>
    %5 = arith.mulf %4, %3 : vector<16x128xf32>
    %6 = math.exp %5 : vector<16x128xf32>
    %7 = math.log1p %6 : vector<16x128xf32>
    %8 = arith.addf %3, %7 : vector<16x128xf32>
    %cst_3 = arith.constant 0.693147182 : f32
    %9 = vector.broadcast %cst_3 : f32 to vector<16x128xf32>
    %10 = arith.subf %8, %9 : vector<16x128xf32>
    %11 = vector.shape_cast %10 : vector<16x128xf32> to vector<2x8x128xf32>
    %cst_4 = arith.constant dense<0.000000e+00> : vector<8x128xf32>
    %12 = vector.multi_reduction <add>, %11, %cst_4 [0] : vector<2x8x128xf32> to vector<8x128xf32>
    %c0_5 = arith.constant 0 : index
    %c0_6 = arith.constant 0 : index
    %c0_7 = arith.constant 0 : index
    %13 = vector.load %arg3[%c0_5, %c0_6, %c0_7] : memref<1x8x128xf32, #tpu.memory_space<vmem>>, vector<1x8x128xf32>
    %14 = vector.shape_cast %13 : vector<1x8x128xf32> to vector<8x128xf32>
    %15 = vector.shape_cast %12 : vector<8x128xf32> to vector<1x8x128xf32>
    tpu.vector_store %arg3[%c0_5, %c0_6, %c0_7], %15 {strides = array<i32>} : memref<1x8x128xf32, #tpu.memory_space<vmem>>, vector<1x8x128xf32>,
    return
  }
  func.func @transform_0(%arg0: i32) -> (i32, i32) {
    %c0_i32 = arith.constant 0 : i32
    %c0_i32_0 = arith.constant 0 : i32
    return %arg0, %c0_i32 : i32, i32
  }
  func.func @transform_1(%arg0: i32) -> (i32, i32) {
    %c0_i32 = arith.constant 0 : i32
    %c0_i32_0 = arith.constant 0 : i32
    return %arg0, %c0_i32 : i32, i32
  }
  func.func @transform_2(%arg0: i32) -> (i32, i32, i32) {
    %c0_i32 = arith.constant 0 : i32
    %c0_i32_0 = arith.constant 0 : i32
    %c0_i32_1 = arith.constant 0 : i32
    return %arg0, %c0_i32, %c0_i32_0 : i32, i32, i32
  }
}

</mosaic_0001>

<llo_original>
// kernel: tpu_custom_call.1
$region0: #{tpu_custom_call.1}
  #allocation0 [shape = 'u32[]', space=smem, size = 0x4, offset = 0x4, fixed_abs, tag = 'smem constant byte address 0x4 - core index']
  #allocation1 [shape = 'u32[144,128]{1,0:T(1,128)}', space=vmem, size = 0x12000, scoped, tag = 'internal scratch']
  %s0 = inlined_call_operand.hbm [shape: f32[16,128], index: 0, kind: input, shape index: {}]
  %s1 = inlined_call_operand.hbm [shape: f32[16,128], index: 1, kind: input, shape index: {}]
  %s2 = inlined_call_operand.hbm [shape: f32[1,8,128], index: 2, kind: output, shape index: {}]
  %s3 = sld [smem:[#allocation0]]
  $region26: #{tpu_custom_call.1} parent=0
    _
  %s5 = ssub.s32 1, %s3
  %s6 = scalar_select 0, %s5, %s3
  $region1: #{tpu_custom_call.1} parent=0
    #allocation2 [shape = 'u8[8192]{0}', space=vmem, size = 0x2000, scoped, tag = 'input window, operand 0, single buffered']
    #allocation3 [shape = 's32[1]{0}', space=sflag, size = 0x4, scoped, tag = 'scoped memory for tpu_custom_call.1']
    #allocation4 [shape = 's32[1]{0}', space=sflag, size = 0x4, scoped, tag = 'scoped memory for tpu_custom_call.1']
    #allocation5 [shape = 'u8[8192]{0}', space=vmem, size = 0x2000, scoped, tag = 'input window, operand 1, single buffered']
    #allocation6 [shape = 's32[1]{0}', space=sflag, size = 0x4, scoped, tag = 'scoped memory for tpu_custom_call.1']
    #allocation7 [shape = 'u8[4096]{0}', space=vmem, size = 0x1000, scoped, tag = 'output window, operand 0, single buffered']
    %7 = vsyncpa [#allocation3], 0
    %8 = vsyncpa [#allocation6], 0
    %9 = vsyncpa [#allocation4], 0
    // Predicated region
    $region2: #{tpu_custom_call.1} parent=1 // pred_check
      _
    $region3: #{tpu_custom_call.1} parent=1 // pred_check_branch
      %11 = sbr.rel (0) target = $region5
    $region4: #{tpu_custom_call.1} parent=1 // pred_region
      %s13 = ssub.s32 256, 256
      %14 = vsyncadd [#allocation3], %s13
      %s15 = sshll.u32 [#allocation2], 4
      %s16 = int_to_ptr.vmem [resolvable:$true] %s15
      %21 = dma.hbm_to_vmem [thread:$0]  %s0, 256, %s16, [#allocation3], 128, 128, 8
    $region5: #{tpu_custom_call.1} parent=1 // pred_fallthru
      _
    // Predicated region
    $region6: #{tpu_custom_call.1} parent=1 // pred_check
      _
    $region7: #{tpu_custom_call.1} parent=1 // pred_check_branch
      %23 = sbr.rel (0) target = $region9
    $region8: #{tpu_custom_call.1} parent=1 // pred_region
      %s25 = ssub.s32 256, 256
      %26 = vsyncadd [#allocation6], %s25
      %s27 = sshll.u32 [#allocation5], 4
      %s28 = int_to_ptr.vmem [resolvable:$true] %s27
      %33 = dma.hbm_to_vmem [thread:$0]  %s1, 256, %s28, [#allocation6], 128, 128, 8
    $region9: #{tpu_custom_call.1} parent=1 // pred_fallthru
      _
    // Predicated region
    $region10: #{tpu_custom_call.1} parent=1 // pred_check
      _
    $region11: #{tpu_custom_call.1} parent=1 // pred_check_branch
      %35 = sbr.rel (0) target = $region13
    $region12: #{tpu_custom_call.1} parent=1 // pred_region
      %36 = dma.done [#allocation3], 256
    $region13: #{tpu_custom_call.1} parent=1 // pred_fallthru
      _
    // Predicated region
    $region14: #{tpu_custom_call.1} parent=1 // pred_check
      _
    $region15: #{tpu_custom_call.1} parent=1 // pred_check_branch
      %38 = sbr.rel (0) target = $region17
    $region16: #{tpu_custom_call.1} parent=1 // pred_region
      %39 = dma.done [#allocation6], 256
    $region17: #{tpu_custom_call.1} parent=1 // pred_fallthru
      _
    %v40 = vld [vmem:[#allocation2] sm:$0xff]
    %v41 = vld [vmem:[#allocation2 + $0x8] sm:$0xff]
    %v42 = vld [vmem:[#allocation5] sm:$0xff]
    %v43 = vld [vmem:[#allocation5 + $0x8] sm:$0xff]
    %v44 = vsub.f32 %v40, %v42
    %v45 = vsub.f32 %v41, %v43
    %v46 = vand.u32 2147483647, %v44
    %v47 = vand.u32 2147483647, %v45
    %v48 = vmul.f32 %v46, -2.0
    %v49 = vmul.f32 %v47, -2.0
    %v50 = vmul.f32 %v48, 1.442695
    %v51 = vpow.pop %v50
    %v52 = vmul.f32 %v49, 1.442695
    %v53 = vpow.pop %v52
    %v54 = vadd.f32 %v51, 1.0
    %v55 = vlog2.pop %v54
    %v56 = vmul.f32 %v55, 0.6931472
    %v57 = vmul.f32 -0.5, %v51
    %v58 = vadd.f32 %v57, 1.0
    %v59 = vmul.f32 %v58, %v51
    %v60 = vand.u32 2147483647, %v51
    %vm61 = vcmp.lt.f32.partialorder %v60, 0.0004427343
    %v62 = vsel %vm61, %v59, %v56
    %v63 = vadd.f32 %v53, 1.0
    %v64 = vlog2.pop %v63
    %v65 = vmul.f32 %v64, 0.6931472
    %v66 = vmul.f32 -0.5, %v53
    %v67 = vadd.f32 %v66, 1.0
    %v68 = vmul.f32 %v67, %v53
    %v69 = vand.u32 2147483647, %v53
    %vm70 = vcmp.lt.f32.partialorder %v69, 0.0004427343
    %v71 = vsel %vm70, %v68, %v65
    %v72 = vadd.f32 %v46, %v62
    %v73 = vadd.f32 %v47, %v71
    %v74 = vsub.f32 %v72, 0.6931472
    %v75 = vsub.f32 %v73, 0.6931472
    %v76 = vadd.f32 %v74, %v75
    %77 = vst [vmem:[#allocation7] sm:$0xff] %v76
    // Predicated region
    $region18: #{tpu_custom_call.1} parent=1 // pred_check
      _
    $region19: #{tpu_custom_call.1} parent=1 // pred_check_branch
      %79 = sbr.rel (0) target = $region21
    $region20: #{tpu_custom_call.1} parent=1 // pred_region
      %s81 = ssub.s32 128, 128
      %82 = vsyncadd [#allocation4], %s81
      %s84 = sshll.u32 [#allocation7], 4
      %s85 = int_to_ptr.vmem [resolvable:$true] %s84
      %87 = dma.vmem_to_hbm [thread:$0]  %s85, 128, %s2, [#allocation4]
    $region21: #{tpu_custom_call.1} parent=1 // pred_fallthru
      _
    // Predicated region
    $region22: #{tpu_custom_call.1} parent=1 // pred_check
      _
    $region23: #{tpu_custom_call.1} parent=1 // pred_check_branch
      %89 = sbr.rel (0) target = $region25
    $region24: #{tpu_custom_call.1} parent=1 // pred_region
      %90 = dma.done [#allocation4], 128
    $region25: #{tpu_custom_call.1} parent=1 // pred_fallthru
      _
    %91 = vsyncpa [#allocation3], 1
    %92 = vsyncpa [#allocation6], 1
    %93 = vsyncpa [#allocation4], 1

</llo_original>
